<compile_context>
chip_gen: v6e
topology: v6e:2x2x1
jax: 0.10.0
libtpu: 0.0.40
codegen_flags: <defaults>
</compile_context>

<pallas_src>
import functools
import math

import numpy as np
import jax
import jax.numpy as jnp
from jax import lax
from jax.experimental import pallas as pl
from jax.experimental.pallas import tpu as pltpu


_LANE = 128
_F32_TEMPS = 3   # x_f32 / y / e live as full-block f32 temporaries in the kernel


def _round_up(x, m):
    return (x + m - 1) // m * m


def _sublane_align(itemsize):
    # VMEM second-minor tiling: 8 for f32, 16 for bf16, 32 for int8/fp8.
    return max(8, 32 // max(int(itemsize), 1))


def _vmem_budget():
    """(vmem_limit_bytes, per-grid-step footprint budget), generation-aware."""
    cap = None
    try:
        cap = getattr(pltpu.get_tpu_info(), "vmem_capacity_bytes", None)
    except Exception:                      # e.g. interpret mode / no TPU visible
        cap = None
    if not isinstance(cap, int) or cap <= 0:
        cap = 64 * 1024 * 1024             # conservative: v7x per-TC VMEM
    limit = min(cap // 2, 64 * 1024 * 1024)    # 32 MiB on v7x, 64 MiB on v5e/v6e
    step_budget = (limit * 3) // 4             # headroom for compiler scratch
    return limit, step_budget


def _per_elem_cost(itemsize):
    # Per-element VMEM footprint of one grid step:
    #   2 double-buffered input blocks + 2 double-buffered output blocks (dtype)
    #   + ~3 full-block f32 temporaries inside the kernel body.
    return 4 * int(itemsize) + 4 * _F32_TEMPS


def _pick_tile(extent, per_unit_bytes, align, budget):
    """Largest `align`-aligned tile (or the full extent) whose footprint fits."""
    max_units = budget // max(per_unit_bytes, 1)
    max_units = max(align, (max_units // align) * align)
    # NOTE: when one aligned unit already exceeds the budget we still return
    # `align` -- the softmax axis must stay fully resident in every block.
    # TODO(synk): vocab-sized softmax lengths need an online-softmax variant
    # (extra "arbitrary" grid axis over L-chunks, running m/l in VMEM scratch,
    # pl.when finalize); not needed for these activation-sized shapes.
    return extent if extent <= max_units else max_units


def _ensure_min_steps(extent, tile, align):
    """If a 'parallel' grid axis collapsed to a single step but is splittable,
    halve the tile so v7x's second TensorCore gets work (harmless elsewhere)."""
    if tile >= extent > align:
        half = _round_up((extent + 1) // 2, align)
        if align <= half < extent:
            return half
    return tile


# --------------------------- pred ** (1 / T) ---------------------------------

def _int_pow(x, n):
    """x ** n for a static python int n >= 1 via square-and-multiply (VPU only)."""
    result = None
    base = x
    m = n
    while m > 0:
        if m & 1:
            result = base if result is None else result * base
        m >>= 1
        if m:
            base = base * base
    return result


def _decompose_exponent(inv_t):
    """('int', k): x**k on the VPU.  ('half', k): x**k * sqrt(x) (one EUP op).
    ('pow', None): jnp.power -> exp(log(x)) on the EUP."""
    r = round(inv_t)
    if abs(inv_t - r) < 1e-9 and 1 <= r <= 64:
        return "int", int(r)
    r = round(inv_t - 0.5)
    if abs(inv_t - 0.5 - r) < 1e-9 and 0 <= r <= 64:
        return "half", int(r)
    return "pow", None


def _apply_power(x, inv_t, kind, k):
    if kind == "int":
        return x if k == 1 else _int_pow(x, k)
    if kind == "half":
        s = jnp.sqrt(x)                       # single EUP op
        return s if k == 0 else _int_pow(x, k) * s
    return jnp.power(x, inv_t)                # fractional 1/T (matches torch: NaN for x<0)


# ------------------------------- kernels -------------------------------------

def _sharpen_softmax_kernel(x_ref, o_ref, *, axis, inv_t, kind, k):
    # Block layouts: (rows, L) with axis=-1, or (pre, L, post) with axis=1.
    x = x_ref[...].astype(jnp.float32)
    y = _apply_power(x, inv_t, kind, k)
    m = jnp.max(y, axis=axis, keepdims=True)      # numerically-stable softmax
    e = jnp.exp(y - m)
    s = jnp.sum(e, axis=axis, keepdims=True)
    o_ref[...] = (e / s).astype(o_ref.dtype)      # exact divide (approx recip broke tol)


def _sharpen_softmax_packed_kernel(x_ref, o_ref, *, group, inv_t, kind, k):
    """Trailing-axis softmax with G = 128/group softmax rows packed per 128-lane row.

    Stabilizer = per-row max (constant within each length-`group` lane group, so
    the softmax value is unchanged and exp() stays <= 1).  Per-group sums are put
    back into every lane with one (128,128) block-diagonal-ones matmul on the
    otherwise-idle MXU.
    """
    x = x_ref[...].astype(jnp.float32)
    y = _apply_power(x, inv_t, kind, k)
    m = jnp.max(y, axis=-1, keepdims=True)
    e = jnp.exp(y - m)
    gi = lax.broadcasted_iota(jnp.int32, (_LANE, _LANE), 0) // group
    gj = lax.broadcasted_iota(jnp.int32, (_LANE, _LANE), 1) // group
    seg = jnp.dot(e, (gi == gj).astype(jnp.float32),
                  preferred_element_type=jnp.float32,
                  precision=lax.Precision.HIGHEST)
    # TODO(synk): the shared row stabilizer assumes the inter-group dynamic range
    # of pred**(1/T) stays within the f32 exp range (~87) -- fine for the
    # probability-like inputs this module is meant for.
    o_ref[...] = (e / seg).astype(o_ref.dtype)


# ------------------------------- wrapper --------------------------------------

def sharpen_softmax(pred, T, dim=0):
    """JAX/Pallas equivalent of SharpenSoftmax(T, dim).forward(pred)."""
    inv_t = 1.0 / float(T)
    kind, k = _decompose_exponent(inv_t)

    ndim = pred.ndim
    dim = dim % ndim
    shape = pred.shape
    dtype = pred.dtype
    itemsize = np.dtype(dtype).itemsize
    sub_align = _sublane_align(itemsize)
    elem_cost = _per_elem_cost(itemsize)
    vmem_limit, step_budget = _vmem_budget()

    L = int(shape[dim])
    pre = int(math.prod(shape[:dim]))
    post = int(math.prod(shape[dim + 1:]))

    pw = dict(inv_t=inv_t, kind=kind, k=k)

    if dim == ndim - 1:
        rows = pre

        # Lane-packed path: L divides 128 -> pack 128/L groups per lane row.
        if 1 < L < _LANE and _LANE % L == 0 and rows % (_LANE // L) == 0:
            rows_p = rows // (_LANE // L)
            x2 = pred.reshape(rows_p, _LANE)            # contiguous view, free
            br = _pick_tile(rows_p, _LANE * elem_cost, sub_align, step_budget)
            br = _ensure_min_steps(rows_p, br, sub_align)
            out2 = pl.pallas_call(
                functools.partial(_sharpen_softmax_packed_kernel, group=L, **pw),
                out_shape=jax.ShapeDtypeStruct((rows_p, _LANE), dtype),
                grid_spec=pltpu.PrefetchScalarGridSpec(
                    num_scalar_prefetch=0,
                    grid=(pl.cdiv(rows_p, br),),
                    in_specs=[pl.BlockSpec((br, _LANE), lambda i: (i, 0))],
                    out_specs=pl.BlockSpec((br, _LANE), lambda i: (i, 0)),
                ),
                compiler_params=pltpu.CompilerParams(
                    dimension_semantics=("parallel",),
                    vmem_limit_bytes=vmem_limit),
            )(x2)
            return out2.reshape(shape)

        # Plain trailing-axis softmax: (rows, L), reduce over lanes.
        x2 = pred.reshape(rows, L)
        per_row = _round_up(L, _LANE) * elem_cost       # lane padding accounted
        br = _pick_tile(rows, per_row, sub_align, step_budget)
        br = _ensure_min_steps(rows, br, sub_align)
        out2 = pl.pallas_call(
            functools.partial(_sharpen_softmax_kernel, axis=-1, **pw),
            out_shape=jax.ShapeDtypeStruct((rows, L), dtype),
            grid_spec=pltpu.PrefetchScalarGridSpec(
                num_scalar_prefetch=0,
                grid=(pl.cdiv(rows, br),),
                in_specs=[pl.BlockSpec((br, L), lambda i: (i, 0))],
                out_specs=pl.BlockSpec((br, L), lambda i: (i, 0)),
            ),
            compiler_params=pltpu.CompilerParams(
                dimension_semantics=("parallel",),
                vmem_limit_bytes=vmem_limit),
        )(x2)
        return out2.reshape(shape)

    # Non-trailing softmax axis: (pre, L, post), reduce over sublanes (axis 1).
    # `post` (e.g. H*W for NCHW dim=1) maps to lanes -> lane-dense loads/stores.
    x3 = pred.reshape(pre, L, post)
    padded_L = _round_up(L, sub_align)                  # sublane padding accounted
    bq = _pick_tile(post, padded_L * elem_cost, _LANE, step_budget)
    bp = _pick_tile(pre, padded_L * _round_up(bq, _LANE) * elem_cost, 1, step_budget)
    if -(-pre // bp) * (-(-post // bq)) == 1:           # v7x megacore: >= 2 steps
        if post > _LANE:
            bq = _ensure_min_steps(post, bq, _LANE)
        elif pre > 1:
            bp = _ensure_min_steps(pre, bp, 1)
    out3 = pl.pallas_call(
        functools.partial(_sharpen_softmax_kernel, axis=1, **pw),
        out_shape=jax.ShapeDtypeStruct((pre, L, post), dtype),
        grid_spec=pltpu.PrefetchScalarGridSpec(
            num_scalar_prefetch=0,
            grid=(pl.cdiv(pre, bp), pl.cdiv(post, bq)),
            in_specs=[pl.BlockSpec((bp, L, bq), lambda i, j: (i, 0, j))],
            out_specs=pl.BlockSpec((bp, L, bq), lambda i, j: (i, 0, j)),
        ),
        compiler_params=pltpu.CompilerParams(
            dimension_semantics=("parallel", "parallel"),
            vmem_limit_bytes=vmem_limit),
    )(x3)
    return out3.reshape(shape)


if __name__ == "__main__":
    key = jax.random.PRNGKey(0)
    # Positive, probability-like inputs (fractional 1/T on negatives is NaN in
    # both torch and here -- the module sharpens probabilities).
    x = jax.random.uniform(key, (2, 4, 16, 16), dtype=jnp.float32,
                           minval=0.05, maxval=1.0)

    rtol, atol = 1e-3, 1e-6

    def ref(v, T, d):
        return jax.nn.softmax(jnp.power(v, 1.0 / T), axis=d)

    # dim=1: channel softmax (non-trailing / sublane-reduce path), 1/T = 2 ->
    # integer-power fast path (x*x on the VPU).
    out = jax.block_until_ready(sharpen_softmax(x, T=0.5, dim=1))
    np.testing.assert_allclose(np.asarray(out), np.asarray(ref(x, 0.5, 1)),
                               rtol=rtol, atol=atol)

    # dim=0: the module's default dim.
    out = jax.block_until_ready(sharpen_softmax(x, T=0.5, dim=0))
    np.testing.assert_allclose(np.asarray(out), np.asarray(ref(x, 0.5, 0)),
                               rtol=rtol, atol=atol)

    # dim=3: trailing axis with L=16 -> lane-packed path; fractional 1/T (exp+log).
    out = jax.block_until_ready(sharpen_softmax(x, T=0.75, dim=3))
    np.testing.assert_allclose(np.asarray(out), np.asarray(ref(x, 0.75, 3)),
                               rtol=rtol, atol=atol)

    # dim=3 with a half-integer exponent (1/T = 2.5 -> x*x*sqrt(x), one EUP op).
    out = jax.block_until_ready(sharpen_softmax(x, T=0.4, dim=3))
    np.testing.assert_allclose(np.asarray(out), np.asarray(ref(x, 0.4, 3)),
                               rtol=rtol, atol=atol)

    # Trailing axis with L that does not divide 128 -> plain lane-softmax path.
    y = jax.random.uniform(jax.random.PRNGKey(1), (2, 8, 24), dtype=jnp.float32,
                           minval=0.05, maxval=1.0)
    out = jax.block_until_ready(sharpen_softmax(y, T=0.5, dim=2))
    np.testing.assert_allclose(np.asarray(out), np.asarray(ref(y, 0.5, 2)),
                               rtol=rtol, atol=atol)

    print("KERNEL_OK")
</pallas_src>

<mosaic_0001>
module attributes {stable_mosaic.version = 11 : i64} {
  func.func @_sharpen_softmax_kernel(%arg0: i32, %arg1: i32, %arg2: memref<2x4x128xf32, #tpu.memory_space<vmem>>, %arg3: memref<2x4x128xf32, #tpu.memory_space<vmem>>) attributes {dimension_semantics = [#tpu.dimension_semantics<parallel>, #tpu.dimension_semantics<parallel>], iteration_bounds = array<i64: 1, 2>, scalar_prefetch = 0 : i64, scratch_operands = 0 : i64, tpu.core_type = #tpu.core_type<tc>, window_params = [{transform_indices = @transform_0, window_bounds = array<i64: 2, 4, 128>}, {transform_indices = @transform_1, window_bounds = array<i64: 2, 4, 128>}]} {
    %c0 = arith.constant 0 : index
    %c0_0 = arith.constant 0 : index
    %c0_1 = arith.constant 0 : index
    %0 = vector.load %arg2[%c0, %c0_0, %c0_1] : memref<2x4x128xf32, #tpu.memory_space<vmem>>, vector<2x4x128xf32>
    %1 = arith.mulf %0, %0 : vector<2x4x128xf32>
    %cst = arith.constant dense<0xFF800000> : vector<2x128xf32>
    %2 = vector.multi_reduction <maximumf>, %1, %cst [1] : vector<2x4x128xf32> to vector<2x128xf32>
    %3 = vector.shape_cast %2 : vector<2x128xf32> to vector<2x1x128xf32>
    %4 = vector.broadcast %3 : vector<2x1x128xf32> to vector<2x4x128xf32>
    %5 = arith.subf %1, %4 : vector<2x4x128xf32>
    %6 = math.exp %5 : vector<2x4x128xf32>
    %cst_2 = arith.constant dense<0.000000e+00> : vector<2x128xf32>
    %7 = vector.multi_reduction <add>, %6, %cst_2 [1] : vector<2x4x128xf32> to vector<2x128xf32>
    %8 = vector.shape_cast %7 : vector<2x128xf32> to vector<2x1x128xf32>
    %9 = vector.broadcast %8 : vector<2x1x128xf32> to vector<2x4x128xf32>
    %10 = arith.divf %6, %9 : vector<2x4x128xf32>
    %c0_3 = arith.constant 0 : index
    %c0_4 = arith.constant 0 : index
    %c0_5 = arith.constant 0 : index
    %11 = vector.load %arg3[%c0_3, %c0_4, %c0_5] : memref<2x4x128xf32, #tpu.memory_space<vmem>>, vector<2x4x128xf32>
    tpu.vector_store %arg3[%c0_3, %c0_4, %c0_5], %10 {strides = array<i32>} : memref<2x4x128xf32, #tpu.memory_space<vmem>>, vector<2x4x128xf32>,
    return
  }
  func.func @transform_0(%arg0: i32, %arg1: i32) -> (i32, i32, i32) {
    %c0_i32 = arith.constant 0 : i32
    %c0_i32_0 = arith.constant 0 : i32
    return %arg0, %c0_i32, %arg1 : i32, i32, i32
  }
  func.func @transform_1(%arg0: i32, %arg1: i32) -> (i32, i32, i32) {
    %c0_i32 = arith.constant 0 : i32
    %c0_i32_0 = arith.constant 0 : i32
    return %arg0, %c0_i32, %arg1 : i32, i32, i32
  }
}

</mosaic_0001>

<llo_original>
// kernel: tpu_custom_call.1
$region0: #{tpu_custom_call.1}
  #allocation0 [shape = 'u32[]', space=smem, size = 0x4, offset = 0x4, fixed_abs, tag = 'smem constant byte address 0x4 - core index']
  #allocation1 [shape = 'u32[144,128]{1,0:T(1,128)}', space=vmem, size = 0x12000, scoped, tag = 'internal scratch']
  %s0 = inlined_call_operand.hbm [shape: f32[2,4,256], index: 0, kind: input, shape index: {}]
  %s1 = inlined_call_operand.hbm [shape: f32[2,4,256], index: 1, kind: output, shape index: {}]
  %s2 = sld [smem:[#allocation0]]
  $region41: #{tpu_custom_call.1} parent=0
    _
  %s4 = ssub.s32 1, %s2
  %s5 = scalar_select 0, %s4, %s2
  $region1: #{tpu_custom_call.1} parent=0
    #allocation2 [shape = 'u8[8192]{0}', space=vmem, size = 0x2000, scoped, tag = 'input window, operand 0']
    #allocation3 [shape = 's32[2]{0}', space=sflag, size = 0x8, scoped, tag = 'scoped memory for tpu_custom_call.1']
    #allocation4 [shape = 's32[2]{0}', space=sflag, size = 0x8, scoped, tag = 'scoped memory for tpu_custom_call.1']
    #allocation5 [shape = 'u8[8192]{0}', space=vmem, size = 0x2000, scoped, tag = 'output window, operand 0']
    %6 = vsyncpa [#allocation3], 0
    %s7 = scalar_lea.sflag [#allocation3], 1
    %8 = vsyncpa %s7, 0
    %9 = vsyncpa [#allocation4], 0
    %s10 = scalar_lea.sflag [#allocation4], 1
    %11 = vsyncpa %s10, 0
    loop: start=0, step=1, limit=4
    $region2: #{tpu_custom_call.1} parent=1 // loop_pre_header
      _
    $region3: #{tpu_custom_call.1} parent=1 // loop_header
      %s13 = sphi 0, %s17
      %p14 = scmp.ge.s32.totalorder %s13, 4
      %s20 = sphi 0, %s32
      %s21 = sphi 0, %s28
      %s22 = sphi 0, %s20
      %s23 = sphi 0, %s21
      %s24 = sphi 0, %s22
      %s25 = sphi 0, %s23
      %s37 = sphi 0, %s39
      %s40 = sphi 0, %s37
      %s41 = sphi 0, %s40
      %s57 = sphi 0, %s41
      %s65 = sphi 0, %s67
      %s68 = sphi 0, %s65
      %s69 = sphi 0, %s68
      %s85 = sphi 0, %s69
    $region4: #{tpu_custom_call.1} parent=1 // loop_header_branch
      %16 = sbr.rel (%p14) target = $region8
    $region5: #{tpu_custom_call.1} parent=1 // loop_body
      %s18 = ssub.s32 %s13, 1
      %s19 = ssub.s32 %s13, 2
      %s26 = sadd.s32 1, %s21
      %p27 = scmp.ge.s32.totalorder %s26, 2
      %s28 = scalar_select %p27, 0, %s26
      %s29 = sadd.s32 1, %s20
      %s30 = scalar_select %p27, %s29, %s20
      %p31 = scmp.ge.s32.totalorder %s30, 1
      %s32 = scalar_select %p31, 0, %s30
      %s33 = ssub.s32 %s20, %s32
      %s34 = ssub.s32 %s21, %s28
      %s35 = sor.u32 %s33, %s34
      %p36 = scmp.eq.s32.totalorder %s35, 0
      %s38 = sadd.s32 %s37, 1
      %s39 = scalar_select %p36, %s37, %s38
      %p42 = pneg %p36
      %p43 = scmp.eq.s32.totalorder %s13, 1
      %p44 = por %p42, %p43
      %p45 = scmp.ne.s32.totalorder %s37, %s40
      %p46 = scmp.eq.s32.totalorder %s13, 0
      %p47 = por %p45, %p46
      %p48 = scmp.ne.s32.totalorder %s37, %s40
      %p49 = scmp.eq.s32.totalorder %s18, 1
      %p50 = por %p48, %p49
      %p51 = scmp.ne.s32.totalorder %s40, %s41
      %p52 = scmp.eq.s32.totalorder %s18, 0
      %p53 = por %p51, %p52
      %p54 = scmp.ne.s32.totalorder %s40, %s41
      %p55 = scmp.eq.s32.totalorder %s19, 1
      %p56 = por %p54, %p55
      %p58 = scmp.ne.s32.totalorder %s41, %s57
      %p59 = scmp.eq.s32.totalorder %s19, 0
      %p60 = por %p58, %p59
      %s61 = ssub.s32 %s20, %s32
      %s62 = ssub.s32 %s21, %s28
      %s63 = sor.u32 %s61, %s62
      %p64 = scmp.eq.s32.totalorder %s63, 0
      %s66 = sadd.s32 %s65, 1
      %s67 = scalar_select %p64, %s65, %s66
      %p70 = pneg %p64
      %p71 = scmp.eq.s32.totalorder %s13, 1
      %p72 = por %p70, %p71
      %p73 = scmp.ne.s32.totalorder %s65, %s68
      %p74 = scmp.eq.s32.totalorder %s13, 0
      %p75 = por %p73, %p74
      %p76 = scmp.ne.s32.totalorder %s65, %s68
      %p77 = scmp.eq.s32.totalorder %s18, 1
      %p78 = por %p76, %p77
      %p79 = scmp.ne.s32.totalorder %s68, %s69
      %p80 = scmp.eq.s32.totalorder %s18, 0
      %p81 = por %p79, %p80
      %p82 = scmp.ne.s32.totalorder %s68, %s69
      %p83 = scmp.eq.s32.totalorder %s19, 1
      %p84 = por %p82, %p83
      %p86 = scmp.ne.s32.totalorder %s69, %s85
      %p87 = scmp.eq.s32.totalorder %s19, 0
      %p88 = por %p86, %p87
      %p89 = scmp.le.s32.totalorder 1, %s13
      %p90 = scmp.lt.s32.totalorder %s13, 3
      %p91 = pnand %p89, %p90
      %p92 = pneg %p91
      // Predicated region
      $region9: #{tpu_custom_call.1} parent=5 // pred_check
        _
      $region10: #{tpu_custom_call.1} parent=5 // pred_check_branch
        %94 = sbr.rel (%p91) target = $region12
      $region11: #{tpu_custom_call.1} parent=5 // pred_region
        %s95 = ssub.s32 %s13, 1
      $region12: #{tpu_custom_call.1} parent=5 // pred_fallthru
        _
      %p96 = scmp.lt.s32.totalorder %s13, 2
      // Predicated region
      $region13: #{tpu_custom_call.1} parent=5 // pred_check
        %p97 = pneg %p96
      $region14: #{tpu_custom_call.1} parent=5 // pred_check_branch
        %99 = sbr.rel (%p97) target = $region16
      $region15: #{tpu_custom_call.1} parent=5 // pred_region
        // Predicated region
        $region17: #{tpu_custom_call.1} parent=15 // pred_check
          %p100 = pneg %p47
        $region18: #{tpu_custom_call.1} parent=15 // pred_check_branch
          %102 = sbr.rel (%p100) target = $region20
        $region19: #{tpu_custom_call.1} parent=15 // pred_region
          %s103 = sand.u32 %s37, 1
          %s104 = scalar_lea.sflag [#allocation3], %s103
          %s105 = sand.u32 %s37, 1
          %s106 = smul.addr %s105, 8
          %s107 = scalar_lea.vmem [#allocation2], %s106
          %s108 = smul.u32 2, %s20
          %s110 = ssub.s32 128, 128
          %111 = vsyncadd %s104, %s110
          %s112 = smul.addr %s108, 2
          %s113 = sadd.s32 %s21, %s112
          %s114 = smul.addr %s113, 64
          %s115 = scalar_lea.hbm %s0, %s114
          %s116 = sshll.u32 %s107, 4
          %s117 = int_to_ptr.vmem [resolvable:$true] %s116
          %122 = dma.hbm_to_vmem [thread:$0]  %s115, 128, %s117, %s104, 128, 64, 4
        $region20: #{tpu_custom_call.1} parent=15 // pred_fallthru
          _
      $region16: #{tpu_custom_call.1} parent=5 // pred_fallthru
        _
      %p123 = scmp.le.s32.totalorder 1, %s13
      %p124 = scmp.lt.s32.totalorder %s13, 3
      %p125 = pnand %p123, %p124
      %p126 = pneg %p125
      // Predicated region
      $region21: #{tpu_custom_call.1} parent=5 // pred_check
        _
      $region22: #{tpu_custom_call.1} parent=5 // pred_check_branch
        %128 = sbr.rel (%p125) target = $region24
      $region23: #{tpu_custom_call.1} parent=5 // pred_region
        %s129 = ssub.s32 %s13, 1
        %s130 = sand.u32 %s40, 1
        %s131 = scalar_lea.sflag [#allocation3], %s130
        %s132 = sand.u32 %s40, 1
        %s133 = smul.addr %s132, 8
        %s134 = scalar_lea.vmem [#allocation2], %s133
        // Predicated region
        $region25: #{tpu_custom_call.1} parent=23 // pred_check
          %p135 = pneg %p53
        $region26: #{tpu_custom_call.1} parent=23 // pred_check_branch
          %137 = sbr.rel (%p135) target = $region28
        $region27: #{tpu_custom_call.1} parent=23 // pred_region
          %138 = dma.done %s131, 128
        $region28: #{tpu_custom_call.1} parent=23 // pred_fallthru
          _
        %s139 = sand.u32 %s40, 1
        %s140 = scalar_lea.sflag [#allocation3], %s139
        %s141 = sand.u32 %s40, 1
        %s142 = smul.addr %s141, 8
        %s143 = scalar_lea.vmem [#allocation2], %s142
        %p144 = pneg %p53
        %p145 = pneg %p50
        %p146 = pneg %p81
        %p147 = pneg %p78
        %s148 = sand.u32 %s68, 1
        %s149 = scalar_lea.sflag [#allocation4], %s148
        %s150 = sand.u32 %s68, 1
        %s151 = smul.addr %s150, 8
        %s152 = scalar_lea.vmem [#allocation5], %s151
        %s153 = smul.u32 2, %s22
        %s154 = smul.u32 2, %s22
        %v155 = vld [vmem:[%s134] sm:$0xf]
        %v156 = vld [vmem:[%s134 + $0x4] sm:$0xf]
        %v157 = vmul.f32 %v155, %v155
        %v158 = vmul.f32 %v156, %v156
        %vm159 = vcmask 1043456
        %v160 = vsel %vm159, %v157, -inf
        %v161 = vrot.slane %v160, 4
        %v162 = vmax.f32 %v160, %v161
        %v163 = vrot.slane %v162, 2
        %v164 = vmax.f32 %v162, %v163
        %v165 = vrot.slane %v164, 1
        %v166 = vmax.f32 %v164, %v165
        %v167 = vsel %vm159, %v158, -inf
        %v168 = vrot.slane %v167, 4
        %v169 = vmax.f32 %v167, %v168
        %v170 = vrot.slane %v169, 2
        %v171 = vmax.f32 %v169, %v170
        %v172 = vrot.slane %v171, 1
        %v173 = vmax.f32 %v171, %v172
        %v174 = vsub.f32 %v157, %v166
        %v175 = vsub.f32 %v158, %v173
        %v176 = vmul.f32 %v174, 1.442695
        %v177 = vpow.pop %v176
        %v178 = vmul.f32 %v175, 1.442695
        %v179 = vpow.pop %v178
        %v180 = vsel %vm159, %v177, 0.0
        %v181 = vrot.slane %v180, 4
        %v182 = vadd.f32 %v180, %v181
        %v183 = vrot.slane %v182, 2
        %v184 = vadd.f32 %v182, %v183
        %v185 = vrot.slane %v184, 1
        %v186 = vadd.f32 %v184, %v185
        %v187 = vsel %vm159, %v179, 0.0
        %v188 = vrot.slane %v187, 4
        %v189 = vadd.f32 %v187, %v188
        %v190 = vrot.slane %v189, 2
        %v191 = vadd.f32 %v189, %v190
        %v192 = vrot.slane %v191, 1
        %v193 = vadd.f32 %v191, %v192
        %v194 = vrcp.pop %v186
        %v195 = vmul.f32 %v177, %v194
        %v196 = vrcp.pop %v193
        %v197 = vmul.f32 %v179, %v196
        %198 = vst [vmem:[%s152] sm:$0xf] %v195
        %199 = vst [vmem:[%s152 + $0x4] sm:$0xf] %v197
        %s200 = sand.u32 %s68, 1
        %s201 = scalar_lea.sflag [#allocation4], %s200
        %s202 = sand.u32 %s68, 1
        %s203 = smul.addr %s202, 8
        %s204 = scalar_lea.vmem [#allocation5], %s203
        // Predicated region
        $region29: #{tpu_custom_call.1} parent=23 // pred_check
          %p205 = pneg %p78
        $region30: #{tpu_custom_call.1} parent=23 // pred_check_branch
          %207 = sbr.rel (%p205) target = $region32
        $region31: #{tpu_custom_call.1} parent=23 // pred_region
          %s208 = smul.u32 2, %s22
          %s210 = ssub.s32 128, 128
          %211 = vsyncadd %s201, %s210
          %s212 = smul.addr %s208, 2
          %s213 = sadd.s32 %s23, %s212
          %s214 = smul.addr %s213, 64
          %s215 = scalar_lea.hbm %s1, %s214
          %s216 = sshll.u32 %s204, 4
          %s217 = int_to_ptr.vmem [resolvable:$true] %s216
          %222 = dma.vmem_to_hbm [thread:$0]  %s217, 128, %s215, %s201, 64, 128, 4
        $region32: #{tpu_custom_call.1} parent=23 // pred_fallthru
          _
      $region24: #{tpu_custom_call.1} parent=5 // pred_fallthru
        _
      %p223 = scmp.le.s32.totalorder 2, %s13
      // Predicated region
      $region33: #{tpu_custom_call.1} parent=5 // pred_check
        %p224 = pneg %p223
      $region34: #{tpu_custom_call.1} parent=5 // pred_check_branch
        %226 = sbr.rel (%p224) target = $region36
      $region35: #{tpu_custom_call.1} parent=5 // pred_region
        %s227 = ssub.s32 %s13, 2
        // Predicated region
        $region37: #{tpu_custom_call.1} parent=35 // pred_check
          %p228 = pneg %p84
        $region38: #{tpu_custom_call.1} parent=35 // pred_check_branch
          %230 = sbr.rel (%p228) target = $region40
        $region39: #{tpu_custom_call.1} parent=35 // pred_region
          %s231 = sand.u32 %s69, 1
          %s232 = scalar_lea.sflag [#allocation4], %s231
          %s233 = sand.u32 %s69, 1
          %s234 = smul.addr %s233, 8
          %s235 = scalar_lea.vmem [#allocation5], %s234
          %236 = dma.done %s232, 128
        $region40: #{tpu_custom_call.1} parent=35 // pred_fallthru
          _
      $region36: #{tpu_custom_call.1} parent=5 // pred_fallthru
        _
    $region6: #{tpu_custom_call.1} parent=1 // loop_footer
      %s17 = sadd.s32 1, %s13
    $region7: #{tpu_custom_call.1} parent=1 // loop_footer_branch
      %12 = sbr.rel target = $region3
    $region8: #{tpu_custom_call.1} parent=1 // loop_exit
      _
    %237 = vsyncpa [#allocation3], 1
    %s238 = scalar_lea.sflag [#allocation3], 1
    %239 = vsyncpa %s238, 1
    %240 = vsyncpa [#allocation4], 1
    %s241 = scalar_lea.sflag [#allocation4], 1
    %242 = vsyncpa %s241, 1

</llo_original>
